<compile_context>
chip_gen: v7x
topology: tpu7x:2x2x1
jax: 0.10.0
libtpu: 0.0.40
codegen_flags: <defaults>
</compile_context>

<pallas_src>
import jax
import jax.numpy as jnp
from jax import lax
from jax.experimental import pallas as pl
from jax.experimental.pallas import tpu as pltpu

BN_EPS = 1e-5


# ---------------------------------------------------------------------------
# Fused kernel: x, [W_h, gamma, beta] * n_hidden, W_final, b_final, out
# ---------------------------------------------------------------------------
def _make_fused_mlp_kernel(n_hidden):
    def kernel(*refs):
        x_ref = refs[0]
        idx = 1
        h = x_ref[...].astype(jnp.float32)
        for _ in range(n_hidden):
            w_ref, gamma_ref, beta_ref = refs[idx], refs[idx + 1], refs[idx + 2]
            idx += 3
            # Linear (hidden bias omitted: cancels in the BN mean subtraction).
            h = jnp.dot(h, w_ref[...], preferred_element_type=jnp.float32)
            # BatchNorm1d, training mode: batch mean / biased variance.
            mean = jnp.mean(h, axis=0, keepdims=True)
            var = jnp.mean((h - mean) ** 2, axis=0, keepdims=True)
            scale = gamma_ref[...] * lax.rsqrt(var + BN_EPS)   # [1, F]
            shift = beta_ref[...] - mean * scale               # [1, F]
            # BN affine + ReLU as one FMA + max.
            h = jnp.maximum(h * scale + shift, 0.0)
        w_ref, b_ref, o_ref = refs[idx], refs[idx + 1], refs[idx + 2]
        out = jnp.dot(h, w_ref[...], preferred_element_type=jnp.float32) + b_ref[...]
        o_ref[...] = out.astype(o_ref.dtype)

    return kernel


_VMEM_SPEC = pl.BlockSpec(memory_space=pltpu.MemorySpace.VMEM)


def mlp_forward(params, x):
    """Whole-MLP forward as a single pallas_call (all operands VMEM-resident)."""
    hidden = params["hidden"]
    w_fin, b_fin = params["final"]
    n_hidden = len(hidden)

    args = [x]
    for (w_t, _b_unused, gamma, beta) in hidden:
        args.extend((w_t, gamma, beta))   # hidden bias intentionally not passed
    args.extend((w_fin, b_fin))

    B = x.shape[0]
    Fout = w_fin.shape[1]

    return pl.pallas_call(
        _make_fused_mlp_kernel(n_hidden),
        out_shape=jax.ShapeDtypeStruct((B, Fout), jnp.float32),
        in_specs=[_VMEM_SPEC] * len(args),
        out_specs=_VMEM_SPEC,
    )(*args)


# ---------------------------------------------------------------------------
# Parameter init (PyTorch defaults: Linear U(-k,k), k=1/sqrt(fan_in);
# BatchNorm gamma=1, beta=0). Weights stored pre-transposed [in, out];
# bias/gamma/beta stored as [1, out]. Hidden bias is kept in the pytree only
# to validate the bias-cancellation against the reference.
# ---------------------------------------------------------------------------
def init_mlp_params(key, layers):
    n_layers = len(layers) - 1
    hidden = []
    final = None
    for i in range(n_layers):
        fan_in, fan_out = layers[i], layers[i + 1]
        key, kw, kb = jax.random.split(key, 3)
        bound = 1.0 / jnp.sqrt(jnp.float32(fan_in))
        w = jax.random.uniform(kw, (fan_out, fan_in), jnp.float32, -bound, bound)
        b = jax.random.uniform(kb, (fan_out,), jnp.float32, -bound, bound)
        w_t = jnp.asarray(w.T)          # [in, out], transposed once at init
        b_row = b.reshape(1, -1)
        if i < n_layers - 1:
            gamma = jnp.ones((1, fan_out), jnp.float32)
            beta = jnp.zeros((1, fan_out), jnp.float32)
            hidden.append((w_t, b_row, gamma, beta))
        else:
            final = (w_t, b_row)
    return {"hidden": hidden, "final": final}


# Pure-JAX reference (keeps the hidden-layer bias, matching PyTorch exactly,
# so the kernel's bias-dropping optimization is actually verified).
def mlp_reference(params, x):
    h = x
    for (w_t, b, gamma, beta) in params["hidden"]:
        h = h @ w_t + b
        mean = jnp.mean(h, axis=0, keepdims=True)
        var = jnp.mean((h - mean) ** 2, axis=0, keepdims=True)
        h = (h - mean) / jnp.sqrt(var + BN_EPS) * gamma + beta
        h = jnp.maximum(h, 0.0)
    w_t, b = params["final"]
    return h @ w_t + b


if __name__ == "__main__":
    key = jax.random.PRNGKey(0)
    layers = [32, 64, 64, 16]   # MLP(layers)
    batch = 8

    key, kx = jax.random.split(key)
    x = jax.random.normal(kx, (batch, layers[0]), jnp.float32)

    params = init_mlp_params(key, layers)

    fwd = jax.jit(mlp_forward)
    out = jax.block_until_ready(fwd(params, x))

    ref = mlp_reference(params, x)
    assert out.shape == (batch, layers[-1])
    assert jnp.allclose(out, ref, atol=1e-4, rtol=1e-4), "mismatch vs reference"

    print("KERNEL_OK")
</pallas_src>

<mosaic_0001>
module attributes {stable_mosaic.version = 11 : i64} {
  func.func @kernel(%arg0: memref<8x32xf32, #tpu.memory_space<vmem>>, %arg1: memref<32x64xf32, #tpu.memory_space<vmem>>, %arg2: memref<1x64xf32, #tpu.memory_space<vmem>>, %arg3: memref<1x64xf32, #tpu.memory_space<vmem>>, %arg4: memref<64x64xf32, #tpu.memory_space<vmem>>, %arg5: memref<1x64xf32, #tpu.memory_space<vmem>>, %arg6: memref<1x64xf32, #tpu.memory_space<vmem>>, %arg7: memref<64x16xf32, #tpu.memory_space<vmem>>, %arg8: memref<1x16xf32, #tpu.memory_space<vmem>>, %arg9: memref<8x16xf32, #tpu.memory_space<vmem>>) attributes {dimension_semantics = [], scalar_prefetch = 0 : i64, scratch_operands = 0 : i64, tpu.core_type = #tpu.core_type<tc>} {
    %c0 = arith.constant 0 : index
    %c0_0 = arith.constant 0 : index
    %0 = vector.load %arg0[%c0, %c0_0] : memref<8x32xf32, #tpu.memory_space<vmem>>, vector<8x32xf32>
    %c0_1 = arith.constant 0 : index
    %c0_2 = arith.constant 0 : index
    %1 = vector.load %arg1[%c0_1, %c0_2] : memref<32x64xf32, #tpu.memory_space<vmem>>, vector<32x64xf32>
    %cst = arith.constant dense<0.000000e+00> : vector<8x64xf32>
    %2 = tpu.matmul %0, %1, %cst {dimension_numbers = #tpu.dot_dimension_numbers<[1], [0], [0], [1], [0, 0, 1, 1], [], []>} : vector<8x32xf32>, vector<32x64xf32>, vector<8x64xf32> -> vector<8x64xf32>
    %cst_3 = arith.constant dense<0.000000e+00> : vector<64xf32>
    %3 = vector.multi_reduction <add>, %2, %cst_3 [0] : vector<8x64xf32> to vector<64xf32>
    %4 = vector.shape_cast %3 : vector<64xf32> to vector<1x64xf32>
    %cst_4 = arith.constant 8.000000e+00 : f32
    %5 = vector.broadcast %cst_4 : f32 to vector<1x64xf32>
    %6 = arith.divf %4, %5 : vector<1x64xf32>
    %7 = vector.broadcast %6 : vector<1x64xf32> to vector<8x64xf32>
    %8 = arith.subf %2, %7 : vector<8x64xf32>
    %9 = arith.mulf %8, %8 : vector<8x64xf32>
    %cst_5 = arith.constant dense<0.000000e+00> : vector<64xf32>
    %10 = vector.multi_reduction <add>, %9, %cst_5 [0] : vector<8x64xf32> to vector<64xf32>
    %11 = vector.shape_cast %10 : vector<64xf32> to vector<1x64xf32>
    %cst_6 = arith.constant 8.000000e+00 : f32
    %12 = vector.broadcast %cst_6 : f32 to vector<1x64xf32>
    %13 = arith.divf %11, %12 : vector<1x64xf32>
    %c0_7 = arith.constant 0 : index
    %c0_8 = arith.constant 0 : index
    %14 = vector.load %arg2[%c0_7, %c0_8] : memref<1x64xf32, #tpu.memory_space<vmem>>, vector<1x64xf32>
    %cst_9 = arith.constant 9.99999974E-6 : f32
    %15 = vector.broadcast %cst_9 : f32 to vector<1x64xf32>
    %16 = arith.addf %13, %15 : vector<1x64xf32>
    %17 = math.rsqrt %16 : vector<1x64xf32>
    %18 = arith.mulf %14, %17 : vector<1x64xf32>
    %c0_10 = arith.constant 0 : index
    %c0_11 = arith.constant 0 : index
    %19 = vector.load %arg3[%c0_10, %c0_11] : memref<1x64xf32, #tpu.memory_space<vmem>>, vector<1x64xf32>
    %20 = arith.mulf %6, %18 : vector<1x64xf32>
    %21 = arith.subf %19, %20 : vector<1x64xf32>
    %22 = vector.broadcast %18 : vector<1x64xf32> to vector<8x64xf32>
    %23 = arith.mulf %2, %22 : vector<8x64xf32>
    %24 = vector.broadcast %21 : vector<1x64xf32> to vector<8x64xf32>
    %25 = arith.addf %23, %24 : vector<8x64xf32>
    %cst_12 = arith.constant 0.000000e+00 : f32
    %26 = vector.broadcast %cst_12 : f32 to vector<8x64xf32>
    %27 = arith.maximumf %25, %26 : vector<8x64xf32>
    %c0_13 = arith.constant 0 : index
    %c0_14 = arith.constant 0 : index
    %28 = vector.load %arg4[%c0_13, %c0_14] : memref<64x64xf32, #tpu.memory_space<vmem>>, vector<64x64xf32>
    %cst_15 = arith.constant dense<0.000000e+00> : vector<8x64xf32>
    %29 = tpu.matmul %27, %28, %cst_15 {dimension_numbers = #tpu.dot_dimension_numbers<[1], [0], [0], [1], [0, 0, 1, 1], [], []>} : vector<8x64xf32>, vector<64x64xf32>, vector<8x64xf32> -> vector<8x64xf32>
    %cst_16 = arith.constant dense<0.000000e+00> : vector<64xf32>
    %30 = vector.multi_reduction <add>, %29, %cst_16 [0] : vector<8x64xf32> to vector<64xf32>
    %31 = vector.shape_cast %30 : vector<64xf32> to vector<1x64xf32>
    %cst_17 = arith.constant 8.000000e+00 : f32
    %32 = vector.broadcast %cst_17 : f32 to vector<1x64xf32>
    %33 = arith.divf %31, %32 : vector<1x64xf32>
    %34 = vector.broadcast %33 : vector<1x64xf32> to vector<8x64xf32>
    %35 = arith.subf %29, %34 : vector<8x64xf32>
    %36 = arith.mulf %35, %35 : vector<8x64xf32>
    %cst_18 = arith.constant dense<0.000000e+00> : vector<64xf32>
    %37 = vector.multi_reduction <add>, %36, %cst_18 [0] : vector<8x64xf32> to vector<64xf32>
    %38 = vector.shape_cast %37 : vector<64xf32> to vector<1x64xf32>
    %cst_19 = arith.constant 8.000000e+00 : f32
    %39 = vector.broadcast %cst_19 : f32 to vector<1x64xf32>
    %40 = arith.divf %38, %39 : vector<1x64xf32>
    %c0_20 = arith.constant 0 : index
    %c0_21 = arith.constant 0 : index
    %41 = vector.load %arg5[%c0_20, %c0_21] : memref<1x64xf32, #tpu.memory_space<vmem>>, vector<1x64xf32>
    %cst_22 = arith.constant 9.99999974E-6 : f32
    %42 = vector.broadcast %cst_22 : f32 to vector<1x64xf32>
    %43 = arith.addf %40, %42 : vector<1x64xf32>
    %44 = math.rsqrt %43 : vector<1x64xf32>
    %45 = arith.mulf %41, %44 : vector<1x64xf32>
    %c0_23 = arith.constant 0 : index
    %c0_24 = arith.constant 0 : index
    %46 = vector.load %arg6[%c0_23, %c0_24] : memref<1x64xf32, #tpu.memory_space<vmem>>, vector<1x64xf32>
    %47 = arith.mulf %33, %45 : vector<1x64xf32>
    %48 = arith.subf %46, %47 : vector<1x64xf32>
    %49 = vector.broadcast %45 : vector<1x64xf32> to vector<8x64xf32>
    %50 = arith.mulf %29, %49 : vector<8x64xf32>
    %51 = vector.broadcast %48 : vector<1x64xf32> to vector<8x64xf32>
    %52 = arith.addf %50, %51 : vector<8x64xf32>
    %cst_25 = arith.constant 0.000000e+00 : f32
    %53 = vector.broadcast %cst_25 : f32 to vector<8x64xf32>
    %54 = arith.maximumf %52, %53 : vector<8x64xf32>
    %c0_26 = arith.constant 0 : index
    %c0_27 = arith.constant 0 : index
    %55 = vector.load %arg7[%c0_26, %c0_27] : memref<64x16xf32, #tpu.memory_space<vmem>>, vector<64x16xf32>
    %cst_28 = arith.constant dense<0.000000e+00> : vector<8x16xf32>
    %56 = tpu.matmul %54, %55, %cst_28 {dimension_numbers = #tpu.dot_dimension_numbers<[1], [0], [0], [1], [0, 0, 1, 1], [], []>} : vector<8x64xf32>, vector<64x16xf32>, vector<8x16xf32> -> vector<8x16xf32>
    %c0_29 = arith.constant 0 : index
    %c0_30 = arith.constant 0 : index
    %57 = vector.load %arg8[%c0_29, %c0_30] : memref<1x16xf32, #tpu.memory_space<vmem>>, vector<1x16xf32>
    %58 = vector.broadcast %57 : vector<1x16xf32> to vector<8x16xf32>
    %59 = arith.addf %56, %58 : vector<8x16xf32>
    %c0_31 = arith.constant 0 : index
    %c0_32 = arith.constant 0 : index
    %60 = vector.load %arg9[%c0_31, %c0_32] : memref<8x16xf32, #tpu.memory_space<vmem>>, vector<8x16xf32>
    tpu.vector_store %arg9[%c0_31, %c0_32], %59 {strides = array<i32>} : memref<8x16xf32, #tpu.memory_space<vmem>>, vector<8x16xf32>,
    return
  }
}

</mosaic_0001>

<llo_original>
// kernel: mlp_forward.1
$region0: #{mlp_forward.1}
  #allocation0 [shape = 'u32[]', space=smem, size = 0x4, offset = 0x4, fixed_abs, tag = 'smem constant byte address 0x4 - core index']
  #allocation1 [shape = 'u32[144,128]{1,0:T(1,128)}', space=vmem, size = 0x12000, scoped, tag = 'internal scratch']
  %s0 = inlined_call_operand.vmem [shape: f32[8,32], index: 0, kind: input, shape index: {}]
  %s1 = inlined_call_operand.vmem [shape: f32[32,64], index: 1, kind: input, shape index: {}]
  %s2 = inlined_call_operand.vmem [shape: f32[1,64], index: 2, kind: input, shape index: {}]
  %s3 = inlined_call_operand.vmem [shape: f32[1,64], index: 3, kind: input, shape index: {}]
  %s4 = inlined_call_operand.vmem [shape: f32[64,64], index: 4, kind: input, shape index: {}]
  %s5 = inlined_call_operand.hbm [shape: f32[1,64], index: 5, kind: input, shape index: {}]
  %s6 = inlined_call_operand.hbm [shape: f32[1,64], index: 6, kind: input, shape index: {}]
  %s7 = inlined_call_operand.vmem [shape: f32[64,16], index: 7, kind: input, shape index: {}]
  %s8 = inlined_call_operand.hbm [shape: f32[1,16], index: 8, kind: input, shape index: {}]
  %s9 = inlined_call_operand.hbm [shape: f32[8,16], index: 9, kind: output, shape index: {}]
  %s10 = sld [smem:[#allocation0]]
  $region58: #{mlp_forward.1} parent=0
    _
  %s12 = ssub.s32 1, %s10
  %s13 = scalar_select 0, %s12, %s10
  $region1: #{mlp_forward.1} parent=0
    #allocation2 [shape = 'u8[512]{0}', space=vmem, size = 0x400, scoped, tag = 'input window, operand 5, single buffered']
    #allocation3 [shape = 's32[1]{0}', space=sflag, size = 0x4, scoped, tag = 'scoped memory for mlp_forward.1']
    #allocation4 [shape = 's32[1]{0}', space=sflag, size = 0x4, scoped, tag = 'scoped memory for mlp_forward.1']
    #allocation5 [shape = 'u8[512]{0}', space=vmem, size = 0x400, scoped, tag = 'input window, operand 6, single buffered']
    #allocation6 [shape = 's32[1]{0}', space=sflag, size = 0x4, scoped, tag = 'scoped memory for mlp_forward.1']
    #allocation7 [shape = 'u8[512]{0}', space=vmem, size = 0x400, scoped, tag = 'input window, operand 8, single buffered']
    #allocation8 [shape = 'u8[4096]{0}', space=vmem, size = 0x1000, scoped, tag = 'output window, operand 0, single buffered']
    %14 = vsyncpa [#allocation3], 0
    %15 = vsyncpa [#allocation6], 0
    %16 = vsyncpa [#allocation4], 0
    // Predicated region
    $region2: #{mlp_forward.1} parent=1 // pred_check
      _
    $region3: #{mlp_forward.1} parent=1 // pred_check_branch
      %18 = sbr.rel (0) target = $region5
    $region4: #{mlp_forward.1} parent=1 // pred_region
      _
    $region5: #{mlp_forward.1} parent=1 // pred_fallthru
      _
    // Predicated region
    $region6: #{mlp_forward.1} parent=1 // pred_check
      _
    $region7: #{mlp_forward.1} parent=1 // pred_check_branch
      %20 = sbr.rel (0) target = $region9
    $region8: #{mlp_forward.1} parent=1 // pred_region
      _
    $region9: #{mlp_forward.1} parent=1 // pred_fallthru
      _
    // Predicated region
    $region10: #{mlp_forward.1} parent=1 // pred_check
      _
    $region11: #{mlp_forward.1} parent=1 // pred_check_branch
      %22 = sbr.rel (0) target = $region13
    $region12: #{mlp_forward.1} parent=1 // pred_region
      _
    $region13: #{mlp_forward.1} parent=1 // pred_fallthru
      _
    // Predicated region
    $region14: #{mlp_forward.1} parent=1 // pred_check
      _
    $region15: #{mlp_forward.1} parent=1 // pred_check_branch
      %24 = sbr.rel (0) target = $region17
    $region16: #{mlp_forward.1} parent=1 // pred_region
      _
    $region17: #{mlp_forward.1} parent=1 // pred_fallthru
      _
    // Predicated region
    $region18: #{mlp_forward.1} parent=1 // pred_check
      _
    $region19: #{mlp_forward.1} parent=1 // pred_check_branch
      %26 = sbr.rel (0) target = $region21
    $region20: #{mlp_forward.1} parent=1 // pred_region
      _
    $region21: #{mlp_forward.1} parent=1 // pred_fallthru
      _
    // Predicated region
    $region22: #{mlp_forward.1} parent=1 // pred_check
      _
    $region23: #{mlp_forward.1} parent=1 // pred_check_branch
      %28 = sbr.rel (0) target = $region25
    $region24: #{mlp_forward.1} parent=1 // pred_region
      %s30 = ssub.s32 16, 16
      %31 = vsyncadd [#allocation3], %s30
      %s33 = sshll.u32 [#allocation2], 4
      %s34 = int_to_ptr.vmem [resolvable:$true] %s33
      %36 = dma.hbm_to_vmem [thread:$0]  %s5, 16, %s34, [#allocation3]
    $region25: #{mlp_forward.1} parent=1 // pred_fallthru
      _
    // Predicated region
    $region26: #{mlp_forward.1} parent=1 // pred_check
      _
    $region27: #{mlp_forward.1} parent=1 // pred_check_branch
      %38 = sbr.rel (0) target = $region29
    $region28: #{mlp_forward.1} parent=1 // pred_region
      %s40 = ssub.s32 16, 16
      %41 = vsyncadd [#allocation6], %s40
      %s43 = sshll.u32 [#allocation5], 4
      %s44 = int_to_ptr.vmem [resolvable:$true] %s43
      %46 = dma.hbm_to_vmem [thread:$0]  %s6, 16, %s44, [#allocation6]
    $region29: #{mlp_forward.1} parent=1 // pred_fallthru
      _
    // Predicated region
    $region30: #{mlp_forward.1} parent=1 // pred_check
      _
    $region31: #{mlp_forward.1} parent=1 // pred_check_branch
      %48 = sbr.rel (0) target = $region33
    $region32: #{mlp_forward.1} parent=1 // pred_region
      _
    $region33: #{mlp_forward.1} parent=1 // pred_fallthru
      _
    // Predicated region
    $region34: #{mlp_forward.1} parent=1 // pred_check
      _
    $region35: #{mlp_forward.1} parent=1 // pred_check_branch
      %50 = sbr.rel (0) target = $region37
    $region36: #{mlp_forward.1} parent=1 // pred_region
      %s52 = ssub.s32 16, 16
      %53 = vsyncadd [#allocation6], %s52
      %s55 = sshll.u32 [#allocation7], 4
      %s56 = int_to_ptr.vmem [resolvable:$true] %s55
      %58 = dma.hbm_to_vmem [thread:$0]  %s8, 16, %s56, [#allocation6]
    $region37: #{mlp_forward.1} parent=1 // pred_fallthru
      _
    // Predicated region
    $region38: #{mlp_forward.1} parent=1 // pred_check
      _
    $region39: #{mlp_forward.1} parent=1 // pred_check_branch
      %60 = sbr.rel (0) target = $region41
    $region40: #{mlp_forward.1} parent=1 // pred_region
      %61 = dma.done [#allocation3], 16
    $region41: #{mlp_forward.1} parent=1 // pred_fallthru
      _
    // Predicated region
    $region42: #{mlp_forward.1} parent=1 // pred_check
      _
    $region43: #{mlp_forward.1} parent=1 // pred_check_branch
      %63 = sbr.rel (0) target = $region45
    $region44: #{mlp_forward.1} parent=1 // pred_region
      %64 = dma.done [#allocation6], 16
    $region45: #{mlp_forward.1} parent=1 // pred_fallthru
      _
    // Predicated region
    $region46: #{mlp_forward.1} parent=1 // pred_check
      _
    $region47: #{mlp_forward.1} parent=1 // pred_check_branch
      %66 = sbr.rel (0) target = $region49
    $region48: #{mlp_forward.1} parent=1 // pred_region
      %67 = dma.done [#allocation6], 16
    $region49: #{mlp_forward.1} parent=1 // pred_fallthru
      _
    %v68 = vld [vmem:[%s0] sm:$0xff]
    %v69 = vld [vmem:[%s1] sm:$0xff]
    %v70 = vld [vmem:[%s1 + $0x8] sm:$0xff]
    %v71 = vld [vmem:[%s1 + $0x10] sm:$0xff]
    %v72 = vld [vmem:[%s1 + $0x18] sm:$0xff]
    %vm73 = vcmask 261120
    %v75 = vsel %vm73, %v68, 0
    %77 = vmatprep.subr.mxu0 0.0
    %78 = vmatpush1.msra.mxu0 %v69
    %79 = vmatprep.subr.mxu0 0.0
    %80 = vmatpush1.msra.mxu0 %v70
    %81 = vmatprep.subr.mxu0 0.0
    %82 = vmatpush1.msra.mxu0 %v71
    %83 = vmatprep.subr.mxu0 0.0
    %84 = vmatpush1.msra.mxu0 %v72
    %85 = vmatprep.subr.mxu0 0.0
    %86 = vmatpush1.msra.mxu0 0.0
    %87 = vmatprep.subr.mxu0 0.0
    %88 = vmatpush1.msra.mxu0 0.0
    %89 = vmatprep.subr.mxu0 0.0
    %90 = vmatpush1.msra.mxu0 0.0
    %91 = vmatprep.subr.mxu0 0.0
    %92 = vmatpush1.msra.mxu0 0.0
    %93 = vmatprep.subr.mxu0 0.0
    %94 = vmatpush1.msra.mxu0 0.0
    %95 = vmatprep.subr.mxu0 0.0
    %96 = vmatpush1.msra.mxu0 0.0
    %97 = vmatprep.subr.mxu0 0.0
    %98 = vmatpush1.msra.mxu0 0.0
    %99 = vmatprep.subr.mxu0 0.0
    %100 = vmatpush1.msra.mxu0 0.0
    %101 = vmatprep.subr.mxu0 0.0
    %102 = vmatpush1.msra.mxu0 0.0
    %103 = vmatprep.subr.mxu0 0.0
    %104 = vmatpush1.msra.mxu0 0.0
    %105 = vmatprep.subr.mxu0 0.0
    %106 = vmatpush1.msra.mxu0 0.0
    %107 = vmatprep.subr.mxu0 0.0
    %108 = vmatpush1.msra.mxu0 0.0
    %109 = vmatprep.subr.mxu0 0.0
    %110 = vmatpush1.msra.mxu0 0.0
    %111 = vmatprep.subr.mxu0 0.0
    %112 = vmatpush1.msra.mxu0 0.0
    %113 = vmatprep.subr.mxu0 0.0
    %114 = vmatpush1.msra.mxu0 0.0
    %115 = vmatprep.subr.mxu0 0.0
    %116 = vmatpush1.msra.mxu0 0.0
    %117 = vmatprep.subr.mxu0 0.0
    %118 = vmatpush1.msra.mxu0 0.0
    %119 = vmatprep.subr.mxu0 0.0
    %120 = vmatpush1.msra.mxu0 0.0
    %121 = vmatprep.subr.mxu0 0.0
    %122 = vmatpush1.msra.mxu0 0.0
    %123 = vmatprep.subr.mxu0 0.0
    %124 = vmatpush1.msra.mxu0 0.0
    %125 = vmatprep.subr.mxu0 0.0
    %126 = vmatpush1.msra.mxu0 0.0
    %127 = vmatprep.subr.mxu0 0.0
    %128 = vmatpush1.msra.mxu0 0.0
    %129 = vmatprep.subr.mxu0 0.0
    %130 = vmatpush1.msra.mxu0 0.0
    %131 = vmatprep.subr.mxu0 0.0
    %132 = vmatpush1.msra.mxu0 0.0
    %133 = vmatprep.subr.mxu0 0.0
    %134 = vmatpush1.msra.mxu0 0.0
    %135 = vmatprep.subr.mxu0 0.0
    %136 = vmatpush1.msra.mxu0 0.0
    %137 = vmatprep.subr.mxu0 0.0
    %138 = vmatpush1.msra.mxu0 0.0
    %139 = vmatprep.subr.mxu0 0.0
    %140 = vmatpush1.msra.mxu0 0.0
    %141 = vmatprep.mubr.f32.mxu0 0.0
    %142 = vmatmul.mubr.f32.gmra.mrb[0].mxu0 %v75
    %v143 = vpop.f32.mrb[0].mxu0
    %v144 = vadd.f32 0.0, %v143
    %v145 = vpop.f32.mrb[0].mxu0
    %146 = vdwg.mxu0
    %vm147 = vcmask 523264
    %v148 = vsel %vm147, %v144, 0.0
    %v149 = vrot.slane %v148, 4
    %v150 = vadd.f32 %v148, %v149
    %v151 = vrot.slane %v150, 2
    %v152 = vadd.f32 %v150, %v151
    %v153 = vrot.slane %v152, 1
    %v154 = vadd.f32 %v152, %v153
    %v155 = vrcp.pop 8.0
    %v156 = vmul.f32 %v154, %v155
    %v157 = vsub.f32 %v144, %v156
    %v158 = vmul.f32 %v157, %v157
    %v159 = vsel %vm147, %v158, 0.0
    %v160 = vrot.slane %v159, 4
    %v161 = vadd.f32 %v159, %v160
    %v162 = vrot.slane %v161, 2
    %v163 = vadd.f32 %v161, %v162
    %v164 = vrot.slane %v163, 1
    %v165 = vadd.f32 %v163, %v164
    %v166 = vmul.f32 %v165, %v155
    %v167 = vld [vmem:[%s2] sm:$0x1]
    %v168 = vadd.f32 %v166, 1e-05
    %v169 = vrsqrt.pop %v168
    %v170 = vmul.f32 %v167, %v169
    %v171 = vld [vmem:[%s3] sm:$0x1]
    %v172 = vmul.f32 %v156, %v170
    %v173 = vsub.f32 %v171, %v172
    %v175 = vlaneseq
    %v176 = vshrl.u32 %v175, 7
    %v177 = vsub.s32 0, %v176
    %v178 = vrot.slane %v170, %v177
    %v180 = vmul.f32 %v144, %v178
    %v182 = vlaneseq
    %v183 = vshrl.u32 %v182, 7
    %v184 = vsub.s32 0, %v183
    %v185 = vrot.slane %v173, %v184
    %v187 = vadd.f32 %v180, %v185
    %v188 = vmax.f32 %v187, 0.0
    %v189 = vld [vmem:[%s4] sm:$0xff]
    %v190 = vld [vmem:[%s4 + $0x8] sm:$0xff]
    %v191 = vld [vmem:[%s4 + $0x10] sm:$0xff]
    %v192 = vld [vmem:[%s4 + $0x18] sm:$0xff]
    %v193 = vld [vmem:[%s4 + $0x20] sm:$0xff]
    %v194 = vld [vmem:[%s4 + $0x28] sm:$0xff]
    %v195 = vld [vmem:[%s4 + $0x30] sm:$0xff]
    %v196 = vld [vmem:[%s4 + $0x38] sm:$0xff]
    %v198 = vsel %vm147, %v188, 0
    %200 = vmatprep.subr.mxu0 0.0
    %201 = vmatpush1.msra.mxu0 %v189
    %202 = vmatprep.subr.mxu0 0.0
    %203 = vmatpush1.msra.mxu0 %v190
    %204 = vmatprep.subr.mxu0 0.0
    %205 = vmatpush1.msra.mxu0 %v191
    %206 = vmatprep.subr.mxu0 0.0
    %207 = vmatpush1.msra.mxu0 %v192
    %208 = vmatprep.subr.mxu0 0.0
    %209 = vmatpush1.msra.mxu0 %v193
    %210 = vmatprep.subr.mxu0 0.0
    %211 = vmatpush1.msra.mxu0 %v194
    %212 = vmatprep.subr.mxu0 0.0
    %213 = vmatpush1.msra.mxu0 %v195
    %214 = vmatprep.subr.mxu0 0.0
    %215 = vmatpush1.msra.mxu0 %v196
    %216 = vmatprep.subr.mxu0 0.0
    %217 = vmatpush1.msra.mxu0 0.0
    %218 = vmatprep.subr.mxu0 0.0
    %219 = vmatpush1.msra.mxu0 0.0
    %220 = vmatprep.subr.mxu0 0.0
    %221 = vmatpush1.msra.mxu0 0.0
    %222 = vmatprep.subr.mxu0 0.0
    %223 = vmatpush1.msra.mxu0 0.0
    %224 = vmatprep.subr.mxu0 0.0
    %225 = vmatpush1.msra.mxu0 0.0
    %226 = vmatprep.subr.mxu0 0.0
    %227 = vmatpush1.msra.mxu0 0.0
    %228 = vmatprep.subr.mxu0 0.0
    %229 = vmatpush1.msra.mxu0 0.0
    %230 = vmatprep.subr.mxu0 0.0
    %231 = vmatpush1.msra.mxu0 0.0
    %232 = vmatprep.subr.mxu0 0.0
    %233 = vmatpush1.msra.mxu0 0.0
    %234 = vmatprep.subr.mxu0 0.0
    %235 = vmatpush1.msra.mxu0 0.0
    %236 = vmatprep.subr.mxu0 0.0
    %237 = vmatpush1.msra.mxu0 0.0
    %238 = vmatprep.subr.mxu0 0.0
    %239 = vmatpush1.msra.mxu0 0.0
    %240 = vmatprep.subr.mxu0 0.0
    %241 = vmatpush1.msra.mxu0 0.0
    %242 = vmatprep.subr.mxu0 0.0
    %243 = vmatpush1.msra.mxu0 0.0
    %244 = vmatprep.subr.mxu0 0.0
    %245 = vmatpush1.msra.mxu0 0.0
    %246 = vmatprep.subr.mxu0 0.0
    %247 = vmatpush1.msra.mxu0 0.0
    %248 = vmatprep.subr.mxu0 0.0
    %249 = vmatpush1.msra.mxu0 0.0
    %250 = vmatprep.subr.mxu0 0.0
    %251 = vmatpush1.msra.mxu0 0.0
    %252 = vmatprep.subr.mxu0 0.0
    %253 = vmatpush1.msra.mxu0 0.0
    %254 = vmatprep.subr.mxu0 0.0
    %255 = vmatpush1.msra.mxu0 0.0
    %256 = vmatprep.subr.mxu0 0.0
    %257 = vmatpush1.msra.mxu0 0.0
    %258 = vmatprep.subr.mxu0 0.0
    %259 = vmatpush1.msra.mxu0 0.0
    %260 = vmatprep.subr.mxu0 0.0
    %261 = vmatpush1.msra.mxu0 0.0
    %262 = vmatprep.subr.mxu0 0.0
    %263 = vmatpush1.msra.mxu0 0.0
    %264 = vmatprep.mubr.f32.mxu0 0.0
    %265 = vmatmul.mubr.f32.gmra.mrb[0].mxu0 %v198
    %v266 = vpop.f32.mrb[0].mxu0
    %v267 = vadd.f32 0.0, %v266
    %v268 = vpop.f32.mrb[0].mxu0
    %269 = vdwg.mxu0
    %v270 = vsel %vm147, %v267, 0.0
    %v271 = vrot.slane %v270, 4
    %v272 = vadd.f32 %v270, %v271
    %v273 = vrot.slane %v272, 2
    %v274 = vadd.f32 %v272, %v273
    %v275 = vrot.slane %v274, 1
    %v276 = vadd.f32 %v274, %v275
    %v277 = vmul.f32 %v276, %v155
    %v278 = vsub.f32 %v267, %v277
    %v279 = vmul.f32 %v278, %v278
    %v280 = vsel %vm147, %v279, 0.0
    %v281 = vrot.slane %v280, 4
    %v282 = vadd.f32 %v280, %v281
    %v283 = vrot.slane %v282, 2
    %v284 = vadd.f32 %v282, %v283
    %v285 = vrot.slane %v284, 1
    %v286 = vadd.f32 %v284, %v285
    %v287 = vmul.f32 %v286, %v155
    %v288 = vld [vmem:[#allocation2] sm:$0x1]
    %v289 = vadd.f32 %v287, 1e-05
    %v290 = vrsqrt.pop %v289
    %v291 = vmul.f32 %v288, %v290
    %v292 = vld [vmem:[#allocation5] sm:$0x1]
    %v293 = vmul.f32 %v277, %v291
    %v294 = vsub.f32 %v292, %v293
    %v296 = vlaneseq
    %v297 = vshrl.u32 %v296, 7
    %v298 = vsub.s32 0, %v297
    %v299 = vrot.slane %v291, %v298
    %v301 = vmul.f32 %v267, %v299
    %v303 = vlaneseq
    %v304 = vshrl.u32 %v303, 7
    %v305 = vsub.s32 0, %v304
    %v306 = vrot.slane %v294, %v305
    %v308 = vadd.f32 %v301, %v306
    %v309 = vmax.f32 %v308, 0.0
    %v310 = vld [vmem:[%s7] sm:$0xff]
    %v311 = vld [vmem:[%s7 + $0x8] sm:$0xff]
    %v312 = vld [vmem:[%s7 + $0x10] sm:$0xff]
    %v313 = vld [vmem:[%s7 + $0x18] sm:$0xff]
    %v314 = vld [vmem:[%s7 + $0x20] sm:$0xff]
    %v315 = vld [vmem:[%s7 + $0x28] sm:$0xff]
    %v316 = vld [vmem:[%s7 + $0x30] sm:$0xff]
    %v317 = vld [vmem:[%s7 + $0x38] sm:$0xff]
    %v318 = vld [vmem:[#allocation7] sm:$0x1]
    %v320 = vlaneseq
    %v321 = vshrl.u32 %v320, 7
    %v322 = vsub.s32 0, %v321
    %v323 = vrot.slane %v318, %v322
    %v326 = vsel %vm147, %v309, 0
    %328 = vmatprep.subr.mxu0 0.0
    %329 = vmatpush1.msra.mxu0 %v310
    %330 = vmatprep.subr.mxu0 0.0
    %331 = vmatpush1.msra.mxu0 %v311
    %332 = vmatprep.subr.mxu0 0.0
    %333 = vmatpush1.msra.mxu0 %v312
    %334 = vmatprep.subr.mxu0 0.0
    %335 = vmatpush1.msra.mxu0 %v313
    %336 = vmatprep.subr.mxu0 0.0
    %337 = vmatpush1.msra.mxu0 %v314
    %338 = vmatprep.subr.mxu0 0.0
    %339 = vmatpush1.msra.mxu0 %v315
    %340 = vmatprep.subr.mxu0 0.0
    %341 = vmatpush1.msra.mxu0 %v316
    %342 = vmatprep.subr.mxu0 0.0
    %343 = vmatpush1.msra.mxu0 %v317
    %344 = vmatprep.subr.mxu0 0.0
    %345 = vmatpush1.msra.mxu0 0.0
    %346 = vmatprep.subr.mxu0 0.0
    %347 = vmatpush1.msra.mxu0 0.0
    %348 = vmatprep.subr.mxu0 0.0
    %349 = vmatpush1.msra.mxu0 0.0
    %350 = vmatprep.subr.mxu0 0.0
    %351 = vmatpush1.msra.mxu0 0.0
    %352 = vmatprep.subr.mxu0 0.0
    %353 = vmatpush1.msra.mxu0 0.0
    %354 = vmatprep.subr.mxu0 0.0
    %355 = vmatpush1.msra.mxu0 0.0
    %356 = vmatprep.subr.mxu0 0.0
    %357 = vmatpush1.msra.mxu0 0.0
    %358 = vmatprep.subr.mxu0 0.0
    %359 = vmatpush1.msra.mxu0 0.0
    %360 = vmatprep.subr.mxu0 0.0
    %361 = vmatpush1.msra.mxu0 0.0
    %362 = vmatprep.subr.mxu0 0.0
    %363 = vmatpush1.msra.mxu0 0.0
    %364 = vmatprep.subr.mxu0 0.0
    %365 = vmatpush1.msra.mxu0 0.0
    %366 = vmatprep.subr.mxu0 0.0
    %367 = vmatpush1.msra.mxu0 0.0
    %368 = vmatprep.subr.mxu0 0.0
    %369 = vmatpush1.msra.mxu0 0.0
    %370 = vmatprep.subr.mxu0 0.0
    %371 = vmatpush1.msra.mxu0 0.0
    %372 = vmatprep.subr.mxu0 0.0
    %373 = vmatpush1.msra.mxu0 0.0
    %374 = vmatprep.subr.mxu0 0.0
    %375 = vmatpush1.msra.mxu0 0.0
    %376 = vmatprep.subr.mxu0 0.0
    %377 = vmatpush1.msra.mxu0 0.0
    %378 = vmatprep.subr.mxu0 0.0
    %379 = vmatpush1.msra.mxu0 0.0
    %380 = vmatprep.subr.mxu0 0.0
    %381 = vmatpush1.msra.mxu0 0.0
    %382 = vmatprep.subr.mxu0 0.0
    %383 = vmatpush1.msra.mxu0 0.0
    %384 = vmatprep.subr.mxu0 0.0
    %385 = vmatpush1.msra.mxu0 0.0
    %386 = vmatprep.subr.mxu0 0.0
    %387 = vmatpush1.msra.mxu0 0.0
    %388 = vmatprep.subr.mxu0 0.0
    %389 = vmatpush1.msra.mxu0 0.0
    %390 = vmatprep.subr.mxu0 0.0
    %391 = vmatpush1.msra.mxu0 0.0
    %392 = vmatprep.mubr.f32.mxu0 0.0
    %393 = vmatmul.mubr.f32.gmra.mrb[0].mxu0 %v326
    %v394 = vpop.f32.mrb[0].mxu0
    %v395 = vadd.f32 %v323, %v394
    %v396 = vpop.f32.mrb[0].mxu0
    %397 = vdwg.mxu0
    %vm398 = vcmask 130048
    %399 = vst.msk [vmem:[#allocation8] sm:$0xff] %vm398, %v395
    // Predicated region
    $region50: #{mlp_forward.1} parent=1 // pred_check
      _
    $region51: #{mlp_forward.1} parent=1 // pred_check_branch
      %401 = sbr.rel (0) target = $region53
    $region52: #{mlp_forward.1} parent=1 // pred_region
      %s403 = ssub.s32 128, 128
      %404 = vsyncadd [#allocation4], %s403
      %s406 = sshll.u32 [#allocation8], 4
      %s407 = int_to_ptr.vmem [resolvable:$true] %s406
      %409 = dma.vmem_to_hbm [thread:$0]  %s407, 128, %s9, [#allocation4]
    $region53: #{mlp_forward.1} parent=1 // pred_fallthru
      _
    // Predicated region
    $region54: #{mlp_forward.1} parent=1 // pred_check
      _
    $region55: #{mlp_forward.1} parent=1 // pred_check_branch
      %411 = sbr.rel (0) target = $region57
    $region56: #{mlp_forward.1} parent=1 // pred_region
      %412 = dma.done [#allocation4], 128
    $region57: #{mlp_forward.1} parent=1 // pred_fallthru
      _
    %413 = vsyncpa [#allocation3], 1
    %414 = vsyncpa [#allocation6], 1
    %415 = vsyncpa [#allocation4], 1

</llo_original>
